<compile_context>
chip_gen: v7x
topology: tpu7x:2x2x1
jax: 0.10.0
libtpu: 0.0.40
codegen_flags: <defaults>
</compile_context>

<pallas_src>
import functools

import jax
import jax.numpy as jnp
from jax.experimental import pallas as pl
from jax.experimental.pallas import tpu as pltpu

MARGIN = 0.5
_PER_INPUT_TILE_BYTES = 4 << 20   # ~4 MiB of lane-padded f32 rows per input block


def _round_up(x: int, m: int) -> int:
    return (x + m - 1) // m * m


def _cdiv(a: int, b: int) -> int:
    return (a + b - 1) // b


def _contrastive_kernel(anchor_ref, positive_ref, target_ref, out_ref, acc_ref,
                        *, margin: float, batch: int, block_b: int, steps: int):
    c = pl.program_id(0)   # megacore shard ("parallel")
    i = pl.program_id(1)   # reduction over batch tiles ("arbitrary")

    @pl.when(i == 0)
    def _():
        acc_ref[...] = jnp.zeros_like(acc_ref)

    a = anchor_ref[...].astype(jnp.float32)     # (TB, D)
    p = positive_ref[...].astype(jnp.float32)   # (TB, D)
    # targets assumed exactly 0/1 encoded (int-cast labels) -> exact compare ok
    t = target_ref[...].astype(jnp.float32)     # (TB, 1)

    diff = a - p
    sq_dist = jnp.sum(diff * diff, axis=-1, keepdims=True)    # (TB, 1)
    dist = jnp.sqrt(sq_dist)                                  # only for hinge
    hinge = jnp.maximum(margin - dist, 0.0)
    # positive branch uses sq_dist directly (no sqrt->square round trip)
    loss = jnp.where(t == 1.0, sq_dist, hinge * hinge)        # (TB, 1)

    # In-kernel ragged-tail mask (replaces wrapper-side jnp.pad HBM copies):
    # rows >= batch belong to partial / phantom blocks and contribute 0.
    row0 = (c * steps + i) * block_b
    rows = jax.lax.broadcasted_iota(jnp.int32, loss.shape, 0) + row0
    loss = jnp.where(rows < batch, loss, 0.0)

    # Tiny scalar accumulator; the per-step cross-sublane reduce is XLU work
    # fully hidden under the streaming DMA.
    acc_ref[...] += jnp.sum(loss, keepdims=True)

    # NOTE: out_ref holds unspecified data on all but the last reduction step.
    # This is benign because its block index is constant along axis 1, so only
    # the final value written here is ever flushed to HBM.  Do not change the
    # out index_map without revisiting this.
    @pl.when(i == pl.num_programs(1) - 1)
    def _():
        out_ref[...] = jnp.broadcast_to(acc_ref[...], out_ref.shape)


def contrastive_loss(anchor: jax.Array, positive: jax.Array, target: jax.Array,
                     margin: float = MARGIN, block_b: int | None = None
                     ) -> jax.Array:
    """anchor, positive: (B, D) float (f32 or bf16); target: (B,). Returns scalar f32 loss."""
    B, D = anchor.shape
    assert positive.shape == (B, D)
    assert target.shape == (B,)

    d_pad = _round_up(D, 128)   # lane-padded width actually held in VMEM
    # NOTE: if D is far from a multiple of 128 the tail lanes are wasted in
    # VMEM/VPU (HBM traffic is unaffected); pad D upstream to recover them.

    if block_b is None:
        # ~4 MiB of (lane-padded) f32 per input block: large enough to amortize
        # the ~0.35 us per-grid-step overhead (near HBM roofline), small enough
        # that the double-buffered footprint stays far below v7x's 64 MiB VMEM.
        block_b = _PER_INPUT_TILE_BYTES // (4 * d_pad)
    # Never use more rows per block than half the batch (rounded up), so the
    # 2-way megacore split always has real work on both shards.
    half_rows = _round_up(max(1, (B + 1) // 2), 8)
    block_b = max(8, min(_round_up(block_b, 8), half_rows))

    num_blocks = _cdiv(B, block_b)                    # blocks holding real rows
    grid_blocks = max(2, _round_up(num_blocks, 2))    # even -> both TCs stream
    num_parallel = 2
    steps = grid_blocks // num_parallel
    last_block = num_blocks - 1

    # target is tiny (B elements of HBM traffic); kept f32 (B, 1) for layout
    # robustness at small block_b.  Its lane-padded VMEM size is counted below.
    # TODO(synk): int8 targets would shrink this buffer 4x.
    t2d = target.astype(jnp.float32).reshape(B, 1)

    # Explicit scoped-VMEM budget: 2 inputs x 2 pipeline buffers x tile, plus
    # lane-padded target buffers, output blocks and the scalar accumulator.
    in_tile_bytes = block_b * d_pad * 4
    tgt_tile_bytes = block_b * 128 * 4        # (block_b, 1) f32 pads to 128 lanes
    out_bytes = 8 * 128 * 4
    footprint = 2 * 2 * in_tile_bytes + 2 * tgt_tile_bytes + 3 * out_bytes
    vmem_limit = int(min(48 << 20, max(footprint + (4 << 20), 16 << 20)))

    def in_map(c, i):
        # Clamp phantom (fully out-of-range) blocks onto the last real block;
        # their rows are zeroed by the in-kernel mask, so re-reading is safe.
        return (jnp.minimum(c * steps + i, last_block), 0)

    kernel = functools.partial(_contrastive_kernel, margin=float(margin),
                               batch=B, block_b=block_b, steps=steps)

    itemsize = jnp.dtype(anchor.dtype).itemsize
    cost = pl.CostEstimate(
        flops=3 * B * D + 8 * B,
        transcendentals=B,
        bytes_accessed=2 * B * D * itemsize + 4 * B + num_parallel * out_bytes)

    out = pl.pallas_call(
        kernel,
        out_shape=jax.ShapeDtypeStruct((num_parallel * 8, 128), jnp.float32),
        grid_spec=pltpu.PrefetchScalarGridSpec(
            num_scalar_prefetch=0,
            grid=(num_parallel, steps),
            in_specs=[
                pl.BlockSpec((block_b, D), in_map),
                pl.BlockSpec((block_b, D), in_map),
                pl.BlockSpec((block_b, 1), in_map),
            ],
            # lane-dense (8, 128) partial-sum block per parallel shard
            out_specs=pl.BlockSpec((8, 128), lambda c, i: (c, 0)),
            scratch_shapes=[pltpu.VMEM((1, 1), jnp.float32)],
        ),
        compiler_params=pltpu.CompilerParams(
            dimension_semantics=("parallel", "arbitrary"),
            vmem_limit_bytes=vmem_limit),
        cost_estimate=cost,
    )(anchor, positive, t2d)

    # One partial sum per parallel shard lives at row c*8, lane 0.
    return jnp.sum(out[0::8, 0]) / jnp.float32(B)


def _reference(anchor, positive, target, margin=MARGIN):
    dist = jnp.sqrt(jnp.sum((anchor - positive) ** 2, axis=-1))
    loss = jnp.where(target == 1, dist ** 2,
                     jnp.maximum(margin - dist, 0.0) ** 2)
    return jnp.mean(loss)


if __name__ == "__main__":
    key = jax.random.PRNGKey(0)

    def _check(B, D, block_b=None, dtype=jnp.float32):
        k1, k2, k3 = jax.random.split(jax.random.fold_in(key, B * 1000 + D), 3)
        anchor = jax.random.normal(k1, (B, D), dtype=jnp.float32).astype(dtype)
        positive = jax.random.normal(k2, (B, D), dtype=jnp.float32).astype(dtype)
        target = jax.random.bernoulli(k3, 0.5, (B,)).astype(jnp.int32)

        loss = contrastive_loss(anchor, positive, target, block_b=block_b)
        jax.block_until_ready(loss)

        ref = _reference(anchor.astype(jnp.float32),
                         positive.astype(jnp.float32),
                         target.astype(jnp.float32))
        assert jnp.allclose(loss, ref, atol=1e-5, rtol=1e-5), (B, D, loss, ref)

    _check(16, 128)                       # 2 shards x 1 step
    _check(12, 96)                        # ragged tail rows, masked in-kernel
    _check(64, 128, block_b=16)           # multi-step reduction per shard
    _check(24, 128, block_b=8)            # odd natural block count -> phantom block
    _check(64, 128, dtype=jnp.bfloat16)   # bf16 streaming path

    print("KERNEL_OK")
</pallas_src>

<mosaic_0001>
module attributes {stable_mosaic.version = 11 : i64} {
  func.func @_contrastive_kernel(%arg0: i32, %arg1: i32, %arg2: memref<8x128xf32, #tpu.memory_space<vmem>>, %arg3: memref<8x128xf32, #tpu.memory_space<vmem>>, %arg4: memref<8x1xf32, #tpu.memory_space<vmem>>, %arg5: memref<8x128xf32, #tpu.memory_space<vmem>>, %arg6: memref<1x1xf32, #tpu.memory_space<vmem>>) attributes {dimension_semantics = [#tpu.dimension_semantics<parallel>, #tpu.dimension_semantics<arbitrary>], iteration_bounds = array<i64: 2, 1>, scalar_prefetch = 0 : i64, scratch_operands = 1 : i64, tpu.core_type = #tpu.core_type<tc>, window_params = [{transform_indices = @transform_0, window_bounds = array<i64: 8, 128>}, {transform_indices = @transform_1, window_bounds = array<i64: 8, 128>}, {transform_indices = @transform_2, window_bounds = array<i64: 8, 1>}, {transform_indices = @transform_3, window_bounds = array<i64: 8, 128>}]} {
    %c0_i32 = arith.constant 0 : i32
    %0 = arith.cmpi eq, %arg1, %c0_i32 : i32
    %1 = arith.extui %0 : i1 to i32
    %c0_i32_0 = arith.constant 0 : i32
    %2 = arith.cmpi ne, %1, %c0_i32_0 : i32
    scf.if %2 {
      %cst_17 = arith.constant 0.000000e+00 : f32
      %40 = vector.broadcast %cst_17 : f32 to vector<1x1xf32>
      %c0_18 = arith.constant 0 : index
      %c0_19 = arith.constant 0 : index
      %41 = vector.load %arg6[%c0_18, %c0_19] : memref<1x1xf32, #tpu.memory_space<vmem>>, vector<1x1xf32>
      tpu.vector_store %arg6[%c0_18, %c0_19], %40 {strides = array<i32>} : memref<1x1xf32, #tpu.memory_space<vmem>>, vector<1x1xf32>,
    } else {
    }
    %c0 = arith.constant 0 : index
    %c0_1 = arith.constant 0 : index
    %3 = vector.load %arg2[%c0, %c0_1] : memref<8x128xf32, #tpu.memory_space<vmem>>, vector<8x128xf32>
    %c0_2 = arith.constant 0 : index
    %c0_3 = arith.constant 0 : index
    %4 = vector.load %arg3[%c0_2, %c0_3] : memref<8x128xf32, #tpu.memory_space<vmem>>, vector<8x128xf32>
    %c0_4 = arith.constant 0 : index
    %c0_5 = arith.constant 0 : index
    %5 = vector.load %arg4[%c0_4, %c0_5] : memref<8x1xf32, #tpu.memory_space<vmem>>, vector<8x1xf32>
    %6 = arith.subf %3, %4 : vector<8x128xf32>
    %7 = arith.mulf %6, %6 : vector<8x128xf32>
    %cst = arith.constant dense<0.000000e+00> : vector<8xf32>
    %8 = vector.multi_reduction <add>, %7, %cst [1] : vector<8x128xf32> to vector<8xf32>
    %9 = vector.shape_cast %8 : vector<8xf32> to vector<8x1xf32>
    %10 = math.sqrt %9 : vector<8x1xf32>
    %cst_6 = arith.constant 5.000000e-01 : f32
    %11 = vector.broadcast %cst_6 : f32 to vector<8x1xf32>
    %12 = arith.subf %11, %10 : vector<8x1xf32>
    %cst_7 = arith.constant 0.000000e+00 : f32
    %13 = vector.broadcast %cst_7 : f32 to vector<8x1xf32>
    %14 = arith.maximumf %12, %13 : vector<8x1xf32>
    %cst_8 = arith.constant 1.000000e+00 : f32
    %15 = vector.broadcast %cst_8 : f32 to vector<8x1xf32>
    %16 = arith.cmpf oeq, %5, %15 : vector<8x1xf32>
    %17 = arith.mulf %14, %14 : vector<8x1xf32>
    %18 = arith.select %16, %9, %17 : vector<8x1xi1>, vector<8x1xf32>
    %c1_i32 = arith.constant 1 : i32
    %19 = arith.muli %arg0, %c1_i32 : i32
    %20 = arith.addi %19, %arg1 : i32
    %c8_i32 = arith.constant 8 : i32
    %21 = arith.muli %20, %c8_i32 : i32
    %22 = tpu.iota {dimensions = array<i32: 0>} : vector<8x1xi32>
    %23 = vector.broadcast %21 : i32 to vector<8x1xi32>
    %24 = arith.addi %22, %23 : vector<8x1xi32>
    %c16_i32 = arith.constant 16 : i32
    %25 = vector.broadcast %c16_i32 : i32 to vector<8x1xi32>
    %26 = arith.cmpi slt, %24, %25 : vector<8x1xi32>
    %cst_9 = arith.constant 0.000000e+00 : f32
    %27 = vector.broadcast %cst_9 : f32 to vector<8x1xf32>
    %28 = arith.select %26, %18, %27 : vector<8x1xi1>, vector<8x1xf32>
    %c0_10 = arith.constant 0 : index
    %c0_11 = arith.constant 0 : index
    %29 = vector.load %arg6[%c0_10, %c0_11] : memref<1x1xf32, #tpu.memory_space<vmem>>, vector<1x1xf32>
    %30 = vector.shape_cast %28 : vector<8x1xf32> to vector<1x8x1xf32>
    %cst_12 = arith.constant dense<0.000000e+00> : vector<1xf32>
    %31 = vector.multi_reduction <add>, %30, %cst_12 [1, 2] : vector<1x8x1xf32> to vector<1xf32>
    %32 = vector.shape_cast %31 : vector<1xf32> to vector<1x1x1xf32>
    %33 = vector.extract %32[0, 0, 0] : f32 from vector<1x1x1xf32>
    %34 = vector.broadcast %33 : f32 to vector<1x1xf32>
    %35 = arith.addf %29, %34 : vector<1x1xf32>
    %c0_13 = arith.constant 0 : index
    %c0_14 = arith.constant 0 : index
    %36 = vector.load %arg6[%c0_13, %c0_14] : memref<1x1xf32, #tpu.memory_space<vmem>>, vector<1x1xf32>
    tpu.vector_store %arg6[%c0_13, %c0_14], %35 {strides = array<i32>} : memref<1x1xf32, #tpu.memory_space<vmem>>, vector<1x1xf32>,
    %c0_i32_15 = arith.constant 0 : i32
    %37 = arith.cmpi eq, %arg1, %c0_i32_15 : i32
    %38 = arith.extui %37 : i1 to i32
    %c0_i32_16 = arith.constant 0 : i32
    %39 = arith.cmpi ne, %38, %c0_i32_16 : i32
    scf.if %39 {
      %c0_17 = arith.constant 0 : index
      %c0_18 = arith.constant 0 : index
      %40 = vector.load %arg6[%c0_17, %c0_18] : memref<1x1xf32, #tpu.memory_space<vmem>>, vector<1x1xf32>
      %41 = vector.shape_cast %40 : vector<1x1xf32> to vector<1x1xf32>
      %42 = vector.broadcast %41 : vector<1x1xf32> to vector<8x128xf32>
      %c0_19 = arith.constant 0 : index
      %c0_20 = arith.constant 0 : index
      %43 = vector.load %arg5[%c0_19, %c0_20] : memref<8x128xf32, #tpu.memory_space<vmem>>, vector<8x128xf32>
      tpu.vector_store %arg5[%c0_19, %c0_20], %42 {strides = array<i32>} : memref<8x128xf32, #tpu.memory_space<vmem>>, vector<8x128xf32>,
    } else {
    }
    return
  }
  func.func @transform_0(%arg0: i32, %arg1: i32) -> (i32, i32) {
    %c1_i32 = arith.constant 1 : i32
    %0 = arith.muli %arg0, %c1_i32 : i32
    %1 = arith.addi %0, %arg1 : i32
    %c1_i32_0 = arith.constant 1 : i32
    %2 = arith.minsi %1, %c1_i32_0 : i32
    %c0_i32 = arith.constant 0 : i32
    %c0_i32_1 = arith.constant 0 : i32
    return %2, %c0_i32 : i32, i32
  }
  func.func @transform_1(%arg0: i32, %arg1: i32) -> (i32, i32) {
    %c1_i32 = arith.constant 1 : i32
    %0 = arith.muli %arg0, %c1_i32 : i32
    %1 = arith.addi %0, %arg1 : i32
    %c1_i32_0 = arith.constant 1 : i32
    %2 = arith.minsi %1, %c1_i32_0 : i32
    %c0_i32 = arith.constant 0 : i32
    %c0_i32_1 = arith.constant 0 : i32
    return %2, %c0_i32 : i32, i32
  }
  func.func @transform_2(%arg0: i32, %arg1: i32) -> (i32, i32) {
    %c1_i32 = arith.constant 1 : i32
    %0 = arith.muli %arg0, %c1_i32 : i32
    %1 = arith.addi %0, %arg1 : i32
    %c1_i32_0 = arith.constant 1 : i32
    %2 = arith.minsi %1, %c1_i32_0 : i32
    %c0_i32 = arith.constant 0 : i32
    %c0_i32_1 = arith.constant 0 : i32
    return %2, %c0_i32 : i32, i32
  }
  func.func @transform_3(%arg0: i32, %arg1: i32) -> (i32, i32) {
    %c0_i32 = arith.constant 0 : i32
    %c0_i32_0 = arith.constant 0 : i32
    return %arg0, %c0_i32 : i32, i32
  }
}

</mosaic_0001>

<llo_original>
// kernel: tpu_custom_call.1
$region0: #{tpu_custom_call.1}
  #allocation0 [shape = 'u32[]', space=smem, size = 0x4, offset = 0x4, fixed_abs, tag = 'smem constant byte address 0x4 - core index']
  #allocation1 [shape = 'u32[144,128]{1,0:T(1,128)}', space=vmem, size = 0x12000, scoped, tag = 'internal scratch']
  #allocation2 [shape = 'f32[1,1]{1,0:T(1,128)}', space=vmem, size = 0x200, scoped, tag = 'scratch operand']
  %s0 = inlined_call_operand.vmem [shape: f32[16,128], index: 0, kind: input, shape index: {}]
  %s1 = inlined_call_operand.hbm [shape: f32[16,128], index: 1, kind: input, shape index: {}]
  %s2 = inlined_call_operand.vmem [shape: f32[16,1], index: 2, kind: input, shape index: {}]
  %s3 = inlined_call_operand.hbm [shape: f32[16,128], index: 3, kind: output, shape index: {}]
  %s4 = sld [smem:[#allocation0]]
  $region57: #{tpu_custom_call.1} parent=0
    _
  %s6 = ssub.s32 1, %s4
  %s7 = scalar_select 0, %s6, %s4
  $region1: #{tpu_custom_call.1} parent=0
    #allocation3 [shape = 'u8[8192]{0}', space=vmem, size = 0x2000, scoped, tag = 'input window, operand 1']
    #allocation4 [shape = 's32[2]{0}', space=sflag, size = 0x8, scoped, tag = 'scoped memory for tpu_custom_call.1']
    #allocation5 [shape = 's32[2]{0}', space=sflag, size = 0x8, scoped, tag = 'scoped memory for tpu_custom_call.1']
    #allocation6 [shape = 'u8[8192]{0}', space=vmem, size = 0x2000, scoped, tag = 'output window, operand 0']
    %8 = vsyncpa [#allocation4], 0
    %s9 = scalar_lea.sflag [#allocation4], 1
    %10 = vsyncpa %s9, 0
    %11 = vsyncpa [#allocation5], 0
    %s12 = scalar_lea.sflag [#allocation5], 1
    %13 = vsyncpa %s12, 0
    loop: start=0, step=1, limit=4
    $region2: #{tpu_custom_call.1} parent=1 // loop_pre_header
      _
    $region3: #{tpu_custom_call.1} parent=1 // loop_header
      %s15 = sphi 0, %s19
      %p16 = scmp.ge.s32.totalorder %s15, 4
      %s22 = sphi 0, %s34
      %s23 = sphi 0, %s30
      %s24 = sphi 0, %s22
      %s25 = sphi 0, %s23
      %s26 = sphi 0, %s24
      %s27 = sphi 0, %s25
      %s43 = sphi 0, %s45
      %s46 = sphi 0, %s43
      %s47 = sphi 0, %s46
      %s63 = sphi 0, %s47
      %s75 = sphi 0, %s77
      %s78 = sphi 0, %s75
      %s79 = sphi 0, %s78
      %s95 = sphi 0, %s79
      %s107 = sphi 0, %s109
      %s110 = sphi 0, %s107
      %s111 = sphi 0, %s110
      %s127 = sphi 0, %s111
      %s133 = sphi 0, %s135
      %s136 = sphi 0, %s133
      %s137 = sphi 0, %s136
      %s153 = sphi 0, %s137
    $region4: #{tpu_custom_call.1} parent=1 // loop_header_branch
      %18 = sbr.rel (%p16) target = $region8
    $region5: #{tpu_custom_call.1} parent=1 // loop_body
      %s20 = ssub.s32 %s15, 1
      %s21 = ssub.s32 %s15, 2
      %s28 = sadd.s32 1, %s23
      %p29 = scmp.ge.s32.totalorder %s28, 1
      %s30 = scalar_select %p29, 0, %s28
      %s31 = sadd.s32 1, %s22
      %s32 = scalar_select %p29, %s31, %s22
      %p33 = scmp.ge.s32.totalorder %s32, 2
      %s34 = scalar_select %p33, 0, %s32
      %s35 = sadd.s32 %s22, %s23
      %p36 = scmp.lt.s32.totalorder %s35, 1
      %s37 = scalar_select %p36, %s35, 1
      %s38 = sadd.s32 %s34, %s30
      %p39 = scmp.lt.s32.totalorder %s38, 1
      %s40 = scalar_select %p39, %s38, 1
      %s41 = ssub.s32 %s37, %s40
      %p42 = scmp.eq.s32.totalorder %s41, 0
      %s44 = sadd.s32 %s43, 1
      %s45 = scalar_select %p42, %s43, %s44
      %p48 = pneg %p42
      %p49 = scmp.eq.s32.totalorder %s15, 1
      %p50 = por %p48, %p49
      %p51 = scmp.ne.s32.totalorder %s43, %s46
      %p52 = scmp.eq.s32.totalorder %s15, 0
      %p53 = por %p51, %p52
      %p54 = scmp.ne.s32.totalorder %s43, %s46
      %p55 = scmp.eq.s32.totalorder %s20, 1
      %p56 = por %p54, %p55
      %p57 = scmp.ne.s32.totalorder %s46, %s47
      %p58 = scmp.eq.s32.totalorder %s20, 0
      %p59 = por %p57, %p58
      %p60 = scmp.ne.s32.totalorder %s46, %s47
      %p61 = scmp.eq.s32.totalorder %s21, 1
      %p62 = por %p60, %p61
      %p64 = scmp.ne.s32.totalorder %s47, %s63
      %p65 = scmp.eq.s32.totalorder %s21, 0
      %p66 = por %p64, %p65
      %s67 = sadd.s32 %s22, %s23
      %p68 = scmp.lt.s32.totalorder %s67, 1
      %s69 = scalar_select %p68, %s67, 1
      %s70 = sadd.s32 %s34, %s30
      %p71 = scmp.lt.s32.totalorder %s70, 1
      %s72 = scalar_select %p71, %s70, 1
      %s73 = ssub.s32 %s69, %s72
      %p74 = scmp.eq.s32.totalorder %s73, 0
      %s76 = sadd.s32 %s75, 1
      %s77 = scalar_select %p74, %s75, %s76
      %p80 = pneg %p74
      %p81 = scmp.eq.s32.totalorder %s15, 1
      %p82 = por %p80, %p81
      %p83 = scmp.ne.s32.totalorder %s75, %s78
      %p84 = scmp.eq.s32.totalorder %s15, 0
      %p85 = por %p83, %p84
      %p86 = scmp.ne.s32.totalorder %s75, %s78
      %p87 = scmp.eq.s32.totalorder %s20, 1
      %p88 = por %p86, %p87
      %p89 = scmp.ne.s32.totalorder %s78, %s79
      %p90 = scmp.eq.s32.totalorder %s20, 0
      %p91 = por %p89, %p90
      %p92 = scmp.ne.s32.totalorder %s78, %s79
      %p93 = scmp.eq.s32.totalorder %s21, 1
      %p94 = por %p92, %p93
      %p96 = scmp.ne.s32.totalorder %s79, %s95
      %p97 = scmp.eq.s32.totalorder %s21, 0
      %p98 = por %p96, %p97
      %s99 = sadd.s32 %s22, %s23
      %p100 = scmp.lt.s32.totalorder %s99, 1
      %s101 = scalar_select %p100, %s99, 1
      %s102 = sadd.s32 %s34, %s30
      %p103 = scmp.lt.s32.totalorder %s102, 1
      %s104 = scalar_select %p103, %s102, 1
      %s105 = ssub.s32 %s101, %s104
      %p106 = scmp.eq.s32.totalorder %s105, 0
      %s108 = sadd.s32 %s107, 1
      %s109 = scalar_select %p106, %s107, %s108
      %p112 = pneg %p106
      %p113 = scmp.eq.s32.totalorder %s15, 1
      %p114 = por %p112, %p113
      %p115 = scmp.ne.s32.totalorder %s107, %s110
      %p116 = scmp.eq.s32.totalorder %s15, 0
      %p117 = por %p115, %p116
      %p118 = scmp.ne.s32.totalorder %s107, %s110
      %p119 = scmp.eq.s32.totalorder %s20, 1
      %p120 = por %p118, %p119
      %p121 = scmp.ne.s32.totalorder %s110, %s111
      %p122 = scmp.eq.s32.totalorder %s20, 0
      %p123 = por %p121, %p122
      %p124 = scmp.ne.s32.totalorder %s110, %s111
      %p125 = scmp.eq.s32.totalorder %s21, 1
      %p126 = por %p124, %p125
      %p128 = scmp.ne.s32.totalorder %s111, %s127
      %p129 = scmp.eq.s32.totalorder %s21, 0
      %p130 = por %p128, %p129
      %s131 = ssub.s32 %s22, %s34
      %p132 = scmp.eq.s32.totalorder %s131, 0
      %s134 = sadd.s32 %s133, 1
      %s135 = scalar_select %p132, %s133, %s134
      %p138 = pneg %p132
      %p139 = scmp.eq.s32.totalorder %s15, 1
      %p140 = por %p138, %p139
      %p141 = scmp.ne.s32.totalorder %s133, %s136
      %p142 = scmp.eq.s32.totalorder %s15, 0
      %p143 = por %p141, %p142
      %p144 = scmp.ne.s32.totalorder %s133, %s136
      %p145 = scmp.eq.s32.totalorder %s20, 1
      %p146 = por %p144, %p145
      %p147 = scmp.ne.s32.totalorder %s136, %s137
      %p148 = scmp.eq.s32.totalorder %s20, 0
      %p149 = por %p147, %p148
      %p150 = scmp.ne.s32.totalorder %s136, %s137
      %p151 = scmp.eq.s32.totalorder %s21, 1
      %p152 = por %p150, %p151
      %p154 = scmp.ne.s32.totalorder %s137, %s153
      %p155 = scmp.eq.s32.totalorder %s21, 0
      %p156 = por %p154, %p155
      %p157 = scmp.le.s32.totalorder 1, %s15
      %p158 = scmp.lt.s32.totalorder %s15, 3
      %p159 = pnand %p157, %p158
      %p160 = pneg %p159
      // Predicated region
      $region9: #{tpu_custom_call.1} parent=5 // pred_check
        _
      $region10: #{tpu_custom_call.1} parent=5 // pred_check_branch
        %162 = sbr.rel (%p159) target = $region12
      $region11: #{tpu_custom_call.1} parent=5 // pred_region
        %s163 = ssub.s32 %s15, 1
      $region12: #{tpu_custom_call.1} parent=5 // pred_fallthru
        _
      %p164 = scmp.lt.s32.totalorder %s15, 2
      // Predicated region
      $region13: #{tpu_custom_call.1} parent=5 // pred_check
        %p165 = pneg %p164
      $region14: #{tpu_custom_call.1} parent=5 // pred_check_branch
        %167 = sbr.rel (%p165) target = $region16
      $region15: #{tpu_custom_call.1} parent=5 // pred_region
        // Predicated region
        $region17: #{tpu_custom_call.1} parent=15 // pred_check
          %p168 = pneg %p53
        $region18: #{tpu_custom_call.1} parent=15 // pred_check_branch
          %170 = sbr.rel (%p168) target = $region20
        $region19: #{tpu_custom_call.1} parent=15 // pred_region
          %s171 = sadd.s32 %s22, %s23
          %p172 = scmp.lt.s32.totalorder %s171, 1
          %s173 = scalar_select %p172, %s171, 1
          %p174 = scmp.lt.s32.totalorder %s173, 1
          %s175 = scalar_select %p174, %s173, 1
          %s176 = smul.addr %s175, 8
          %s177 = scalar_lea.vmem %s0, %s176
          %s178 = sadd.s32 %s22, %s23
          %p179 = scmp.lt.s32.totalorder %s178, 1
          %s180 = scalar_select %p179, %s178, 1
        $region20: #{tpu_custom_call.1} parent=15 // pred_fallthru
          _
        // Predicated region
        $region21: #{tpu_custom_call.1} parent=15 // pred_check
          %p181 = pneg %p85
        $region22: #{tpu_custom_call.1} parent=15 // pred_check_branch
          %183 = sbr.rel (%p181) target = $region24
        $region23: #{tpu_custom_call.1} parent=15 // pred_region
          %s184 = sand.u32 %s75, 1
          %s185 = scalar_lea.sflag [#allocation4], %s184
          %s186 = sand.u32 %s75, 1
          %s187 = smul.addr %s186, 8
          %s188 = scalar_lea.vmem [#allocation3], %s187
          %s189 = sadd.s32 %s22, %s23
          %p190 = scmp.lt.s32.totalorder %s189, 1
          %s191 = scalar_select %p190, %s189, 1
          %s193 = ssub.s32 128, 128
          %194 = vsyncadd %s185, %s193
          %s195 = smul.addr %s191, 128
          %s196 = scalar_lea.hbm %s1, %s195
          %s198 = sshll.u32 %s188, 4
          %s199 = int_to_ptr.vmem [resolvable:$true] %s198
          %201 = dma.hbm_to_vmem [thread:$0]  %s196, 128, %s199, %s185
        $region24: #{tpu_custom_call.1} parent=15 // pred_fallthru
          _
        // Predicated region
        $region25: #{tpu_custom_call.1} parent=15 // pred_check
          %p202 = pneg %p117
        $region26: #{tpu_custom_call.1} parent=15 // pred_check_branch
          %204 = sbr.rel (%p202) target = $region28
        $region27: #{tpu_custom_call.1} parent=15 // pred_region
          %s205 = sadd.s32 %s22, %s23
          %p206 = scmp.lt.s32.totalorder %s205, 1
          %s207 = scalar_select %p206, %s205, 1
          %p208 = scmp.lt.s32.totalorder %s207, 1
          %s209 = scalar_select %p208, %s207, 1
          %s210 = smul.addr %s209, 8
          %s211 = scalar_lea.vmem %s2, %s210
          %s212 = sadd.s32 %s22, %s23
          %p213 = scmp.lt.s32.totalorder %s212, 1
          %s214 = scalar_select %p213, %s212, 1
        $region28: #{tpu_custom_call.1} parent=15 // pred_fallthru
          _
      $region16: #{tpu_custom_call.1} parent=5 // pred_fallthru
        _
      %p215 = scmp.le.s32.totalorder 1, %s15
      %p216 = scmp.lt.s32.totalorder %s15, 3
      %p217 = pnand %p215, %p216
      %p218 = pneg %p217
      // Predicated region
      $region29: #{tpu_custom_call.1} parent=5 // pred_check
        _
      $region30: #{tpu_custom_call.1} parent=5 // pred_check_branch
        %220 = sbr.rel (%p217) target = $region32
      $region31: #{tpu_custom_call.1} parent=5 // pred_region
        %s221 = ssub.s32 %s15, 1
        %s222 = sand.u32 %s78, 1
        %s223 = scalar_lea.sflag [#allocation4], %s222
        %s224 = sand.u32 %s78, 1
        %s225 = smul.addr %s224, 8
        %s226 = scalar_lea.vmem [#allocation3], %s225
        // Predicated region
        $region33: #{tpu_custom_call.1} parent=31 // pred_check
          %p227 = pneg %p91
        $region34: #{tpu_custom_call.1} parent=31 // pred_check_branch
          %229 = sbr.rel (%p227) target = $region36
        $region35: #{tpu_custom_call.1} parent=31 // pred_region
          %230 = dma.done %s223, 128
        $region36: #{tpu_custom_call.1} parent=31 // pred_fallthru
          _
        %s231 = sadd.s32 %s24, %s25
        %p232 = scmp.lt.s32.totalorder %s231, 1
        %s233 = scalar_select %p232, %s231, 1
        %p234 = scmp.lt.s32.totalorder %s233, 1
        %s235 = scalar_select %p234, %s233, 1
        %s236 = smul.addr %s235, 8
        %s237 = scalar_lea.vmem %s0, %s236
        %p238 = pneg %p59
        %p239 = pneg %p56
        %s240 = sand.u32 %s78, 1
        %s241 = scalar_lea.sflag [#allocation4], %s240
        %s242 = sand.u32 %s78, 1
        %s243 = smul.addr %s242, 8
        %s244 = scalar_lea.vmem [#allocation3], %s243
        %p245 = pneg %p91
        %p246 = pneg %p88
        %s247 = sadd.s32 %s24, %s25
        %p248 = scmp.lt.s32.totalorder %s247, 1
        %s249 = scalar_select %p248, %s247, 1
        %p250 = scmp.lt.s32.totalorder %s249, 1
        %s251 = scalar_select %p250, %s249, 1
        %s252 = smul.addr %s251, 8
        %s253 = scalar_lea.vmem %s2, %s252
        %p254 = pneg %p123
        %p255 = pneg %p120
        %p256 = pneg %p149
        %p257 = pneg %p146
        %s258 = sand.u32 %s136, 1
        %s259 = scalar_lea.sflag [#allocation5], %s258
        %s260 = sand.u32 %s136, 1
        %s261 = smul.addr %s260, 8
        %s262 = scalar_lea.vmem [#allocation6], %s261
        %s263 = sadd.s32 %s24, %s25
        %p264 = scmp.lt.s32.totalorder %s263, 1
        %s265 = scalar_select %p264, %s263, 1
        %p266 = scmp.lt.s32.totalorder %s265, 1
        %s267 = scalar_select %p266, %s265, 1
        %s268 = smul.addr %s267, 8
        %s269 = scalar_lea.vmem %s0, %s268
        %s270 = sadd.s32 %s24, %s25
        %p271 = scmp.lt.s32.totalorder %s270, 1
        %s272 = scalar_select %p271, %s270, 1
        %s273 = sadd.s32 %s24, %s25
        %p274 = scmp.lt.s32.totalorder %s273, 1
        %s275 = scalar_select %p274, %s273, 1
        %s276 = sadd.s32 %s24, %s25
        %p277 = scmp.lt.s32.totalorder %s276, 1
        %s278 = scalar_select %p277, %s276, 1
        %p279 = scmp.lt.s32.totalorder %s278, 1
        %s280 = scalar_select %p279, %s278, 1
        %s281 = smul.addr %s280, 8
        %s282 = scalar_lea.vmem %s2, %s281
        %s283 = sadd.s32 %s24, %s25
        %p284 = scmp.lt.s32.totalorder %s283, 1
        %s285 = scalar_select %p284, %s283, 1
        %p286 = scmp.eq.s32.totalorder %s25, 0
        // Predicated region
        $region37: #{tpu_custom_call.1} parent=31 // pred_check
          %p287 = pneg %p286
        $region38: #{tpu_custom_call.1} parent=31 // pred_check_branch
          %289 = sbr.rel (%p287) target = $region40
        $region39: #{tpu_custom_call.1} parent=31 // pred_region
          %vm290 = vcmask 0
          %291 = vst.msk [vmem:[#allocation2] sm:$0x1] %vm290, 0.0
        $region40: #{tpu_custom_call.1} parent=31 // pred_fallthru
          _
        %v292 = vld [vmem:[%s269] sm:$0xff]
        %v293 = vld [vmem:[%s226] sm:$0xff]
        %v294 = vld [vmem:[%s282] sm:$0xff]
        %v295 = vsub.f32 %v292, %v293
        %v296 = vmul.f32 %v295, %v295
        %297 = vadd.xlane.f32.xlu0 %v296
        %v298 = vpop.xlane.xlu0 %297
        %v299 = vrsqrt.pop %v298
        %v300 = vmul.f32 %v298, %v299
        %vm301 = vcmp.eq.f32.partialorder %v298, inf
        %v302 = vsel %vm301, %v298, %v300
        %vm303 = vcmp.eq.f32.partialorder %v298, 0.0
        %v304 = vand.u32 %v298, 2147483648
        %v305 = vsel %vm303, %v304, %v302
        %v306 = vsub.f32 0.5, %v305
        %v307 = vmax.f32 %v306, 0.0
        %vm308 = vcmp.eq.f32.partialorder %v294, 1.0
        %v309 = vmul.f32 %v307, %v307
        %v310 = vsel %vm308, %v298, %v309
        %s311 = sadd.s32 %s24, %s25
        %s312 = smul.u32 %s311, 8
        %v313 = vlaneseq
        %v314 = vshrl.u32 %v313, 7
        %v315 = vstv %s312
        %v316 = vadd.s32 %v314, %v315
        %vm317 = vcmp.lt.s32.totalorder %v316, 16
        %v318 = vsel %vm317, %v310, 0.0
        %v319 = vld [vmem:[#allocation2] sm:$0x1]
        %vm320 = vcmask 7168
        %v321 = vsel %vm320, %v318, 0.0
        %322 = vadd.xlane.f32.xlu0 %v321
        %v323 = vpop.xlane.xlu0 %322
        %v324 = vrot.slane %v323, 4
        %v325 = vadd.f32 %v323, %v324
        %v326 = vrot.slane %v325, 2
        %v327 = vadd.f32 %v325, %v326
        %v328 = vrot.slane %v327, 1
        %v329 = vadd.f32 %v327, %v328
        %s330 = vtos %v329
        %v331 = vstv %s330
        %v332 = vadd.f32 %v319, %v331
        %vm333 = vcmask 0
        %334 = vst.msk [vmem:[#allocation2] sm:$0x1] %vm333, %v332
        // Predicated region
        $region41: #{tpu_custom_call.1} parent=31 // pred_check
          %p335 = pneg %p286
        $region42: #{tpu_custom_call.1} parent=31 // pred_check_branch
          %337 = sbr.rel (%p335) target = $region44
        $region43: #{tpu_custom_call.1} parent=31 // pred_region
          %v338 = vld [vmem:[#allocation2] sm:$0x1]
          %v340 = vlaneseq
          %v341 = vshrl.u32 %v340, 7
          %v342 = vsub.s32 0, %v341
          %v343 = vrot.slane %v338, %v342
          %344 = vset.pattern.permute.xlu0 0
          %345 = vperm.xlu0 %344, %v343
          %v346 = vpop.permute.xlu0 %345
          %348 = vst [vmem:[%s262] sm:$0xff] %v346
        $region44: #{tpu_custom_call.1} parent=31 // pred_fallthru
          _
        %s349 = sand.u32 %s136, 1
        %s350 = scalar_lea.sflag [#allocation5], %s349
        %s351 = sand.u32 %s136, 1
        %s352 = smul.addr %s351, 8
        %s353 = scalar_lea.vmem [#allocation6], %s352
        // Predicated region
        $region45: #{tpu_custom_call.1} parent=31 // pred_check
          %p354 = pneg %p146
        $region46: #{tpu_custom_call.1} parent=31 // pred_check_branch
          %356 = sbr.rel (%p354) target = $region48
        $region47: #{tpu_custom_call.1} parent=31 // pred_region
          %s358 = ssub.s32 128, 128
          %359 = vsyncadd %s350, %s358
          %s360 = smul.addr %s24, 128
          %s361 = scalar_lea.hbm %s3, %s360
          %s363 = sshll.u32 %s353, 4
          %s364 = int_to_ptr.vmem [resolvable:$true] %s363
          %366 = dma.vmem_to_hbm [thread:$0]  %s364, 128, %s361, %s350
        $region48: #{tpu_custom_call.1} parent=31 // pred_fallthru
          _
      $region32: #{tpu_custom_call.1} parent=5 // pred_fallthru
        _
      %p367 = scmp.le.s32.totalorder 2, %s15
      // Predicated region
      $region49: #{tpu_custom_call.1} parent=5 // pred_check
        %p368 = pneg %p367
      $region50: #{tpu_custom_call.1} parent=5 // pred_check_branch
        %370 = sbr.rel (%p368) target = $region52
      $region51: #{tpu_custom_call.1} parent=5 // pred_region
        %s371 = ssub.s32 %s15, 2
        // Predicated region
        $region53: #{tpu_custom_call.1} parent=51 // pred_check
          %p372 = pneg %p152
        $region54: #{tpu_custom_call.1} parent=51 // pred_check_branch
          %374 = sbr.rel (%p372) target = $region56
        $region55: #{tpu_custom_call.1} parent=51 // pred_region
          %s375 = sand.u32 %s137, 1
          %s376 = scalar_lea.sflag [#allocation5], %s375
          %s377 = sand.u32 %s137, 1
          %s378 = smul.addr %s377, 8
          %s379 = scalar_lea.vmem [#allocation6], %s378
          %380 = dma.done %s376, 128
        $region56: #{tpu_custom_call.1} parent=51 // pred_fallthru
          _
      $region52: #{tpu_custom_call.1} parent=5 // pred_fallthru
        _
    $region6: #{tpu_custom_call.1} parent=1 // loop_footer
      %s19 = sadd.s32 1, %s15
    $region7: #{tpu_custom_call.1} parent=1 // loop_footer_branch
      %14 = sbr.rel target = $region3
    $region8: #{tpu_custom_call.1} parent=1 // loop_exit
      _
    %381 = vsyncpa [#allocation4], 1
    %s382 = scalar_lea.sflag [#allocation4], 1
    %383 = vsyncpa %s382, 1
    %384 = vsyncpa [#allocation5], 1
    %s385 = scalar_lea.sflag [#allocation5], 1
    %386 = vsyncpa %s385, 1

</llo_original>
